<compile_context>
chip_gen: v7x
topology: tpu7x:2x2x1
jax: 0.10.0
libtpu: 0.0.40
codegen_flags: <defaults>
</compile_context>

<pallas_src>
import functools

import jax
import jax.numpy as jnp
from jax import lax
from jax.experimental import pallas as pl
from jax.experimental.pallas import tpu as pltpu

_FREQ = (0.04272119, 0.10241207, 0.13548531, 0.28421111,
         0.21262745, 0.11806116, 0.10448171)


def _fwiou_kernel(x_ref, t_ref, inter_ref, spred_ref, count_ref, *,
                  n_classes, tile_p, n_pixels):
    """One (image, spatial-tile) grid point.

    Streams the tile 128 lanes at a time, keeping the whole chain register
    resident, and writes lane-partial (C, 128) sums of:
      inter[c] = sum_p pred[c,p] * onehot[c,p]
      spred[c] = sum_p pred[c,p]
      count[c] = sum_p onehot[c,p]
    union is derived algebraically in the epilogue: spred + count - inter.
    """
    tile_idx = pl.program_id(1)
    base = tile_idx * tile_p                      # first pixel of this tile

    # Tiny constants, hoisted out of the inner loop (one vreg each).
    cls = lax.broadcasted_iota(jnp.int32, (n_classes, 128), 0)   # class ids
    lane = lax.broadcasted_iota(jnp.int32, (1, 128), 1)          # lane ids

    n_chunks = tile_p // 128

    def body(k, carry):
        inter_acc, spred_acc, count_acc = carry
        off = pl.multiple_of(k * 128, 128)
        x = x_ref[0, :, pl.ds(off, 128)].astype(jnp.float32)     # (C, 128)
        t = t_ref[0, :, pl.ds(off, 128)]                          # (1, 128)

        # Ragged-tail mask: lanes past the (unpadded) end of the image read
        # unspecified data; select it away before exp / compare can see it.
        valid = (base + off + lane) < n_pixels                    # (1, 128)
        x = jnp.where(valid, x, 0.0)

        # Numerically stable softmax over the class (sublane) axis.
        m = jnp.max(x, axis=0, keepdims=True)                     # (1, 128)
        e = jnp.exp(x - m)
        inv = pl.reciprocal(jnp.sum(e, axis=0, keepdims=True), approx=False)
        pred = jnp.where(valid, e * inv, 0.0)                     # (C, 128)

        onehot = jnp.where((cls == t) & valid, 1.0, 0.0)          # (C, 128)

        inter_acc = inter_acc + pred * onehot
        spred_acc = spred_acc + pred
        count_acc = count_acc + onehot
        return inter_acc, spred_acc, count_acc

    zeros = jnp.zeros((n_classes, 128), jnp.float32)
    inter_acc, spred_acc, count_acc = lax.fori_loop(
        0, n_chunks, body, (zeros, zeros, zeros),
        unroll=min(8, n_chunks))

    inter_ref[0, 0] = inter_acc
    spred_ref[0, 0] = spred_acc
    count_ref[0, 0] = count_acc


def fwiou_loss(inputs, target, n_classes=7, max_tile_p=32768):
    """inputs: (N, C, H, W) logits, target: (N, H, W) int class ids -> scalar f32."""
    N, C, H, W = inputs.shape
    assert C == n_classes
    freq = jnp.asarray(_FREQ, dtype=jnp.float32)
    assert C == freq.shape[0], "FwIoULoss hardcodes 7 class frequencies"
    P = H * W

    x = inputs.reshape(N, C, P)
    t = target.astype(jnp.int32).reshape(N, 1, P)

    # Large spatial tile (multiple of 128). No host-side padding: the ragged
    # last tile is masked inside the kernel.
    p128 = ((P + 127) // 128) * 128
    tile_p = min(max_tile_p, p128)
    num_tiles = pl.cdiv(P, tile_p)

    kernel = functools.partial(_fwiou_kernel, n_classes=C, tile_p=tile_p,
                               n_pixels=P)

    part_shape = jax.ShapeDtypeStruct((N, num_tiles, C, 128), jnp.float32)
    out_block = pl.BlockSpec((1, 1, C, 128), lambda n, p: (n, p, 0, 0))

    inter, spred, count = pl.pallas_call(
        kernel,
        out_shape=(part_shape, part_shape, part_shape),
        grid_spec=pltpu.PrefetchScalarGridSpec(
            num_scalar_prefetch=0,
            grid=(N, num_tiles),
            in_specs=[
                pl.BlockSpec((1, C, tile_p), lambda n, p: (n, 0, p)),
                pl.BlockSpec((1, 1, tile_p), lambda n, p: (n, 0, p)),
            ],
            out_specs=[out_block, out_block, out_block],
        ),
        compiler_params=pltpu.CompilerParams(
            dimension_semantics=("parallel", "parallel")),
    )(x, t)

    # Tiny (N, C) epilogue in JAX: final lane/tile sums + algebraic union.
    inter = jnp.sum(inter, axis=(1, 3))        # (N, C)
    spred = jnp.sum(spred, axis=(1, 3))        # (N, C)
    count = jnp.sum(count, axis=(1, 3))        # (N, C)
    union = spred + count - inter
    loss = 1.0 - inter / (union + 1e-16)
    return jnp.sum(loss * freq)


def _reference(inputs, target, n_classes):
    freq = jnp.asarray(_FREQ, dtype=jnp.float32)
    N = inputs.shape[0]
    pred = jax.nn.softmax(inputs.astype(jnp.float32), axis=1)
    onehot = jax.nn.one_hot(target, n_classes, axis=1, dtype=jnp.float32)
    inter = (pred * onehot).reshape(N, n_classes, -1).sum(-1)
    union = (pred + onehot - pred * onehot).reshape(N, n_classes, -1).sum(-1)
    loss = 1.0 - inter / (union + 1e-16)
    return jnp.sum(loss * freq)


if __name__ == "__main__":
    key = jax.random.PRNGKey(0)
    kx, kt = jax.random.split(key)
    N, C, H, W = 2, 7, 16, 16
    x = jax.random.normal(kx, (N, C, H, W), dtype=jnp.float32)
    target = jax.random.randint(kt, (N, H, W), 0, C, dtype=jnp.int32)

    out = jax.block_until_ready(fwiou_loss(x, target, n_classes=C))
    ref = jax.block_until_ready(_reference(x, target, C))
    assert jnp.allclose(out, ref, rtol=1e-5, atol=1e-5), (out, ref)
    print("KERNEL_OK")
</pallas_src>

<mosaic_0001>
module attributes {stable_mosaic.version = 11 : i64} {
  func.func @_fwiou_kernel(%arg0: i32, %arg1: i32, %arg2: memref<1x7x256xf32, #tpu.memory_space<vmem>>, %arg3: memref<1x1x256xi32, #tpu.memory_space<vmem>>, %arg4: memref<1x1x7x128xf32, #tpu.memory_space<vmem>>, %arg5: memref<1x1x7x128xf32, #tpu.memory_space<vmem>>, %arg6: memref<1x1x7x128xf32, #tpu.memory_space<vmem>>) attributes {dimension_semantics = [#tpu.dimension_semantics<parallel>, #tpu.dimension_semantics<parallel>], iteration_bounds = array<i64: 2, 1>, scalar_prefetch = 0 : i64, scratch_operands = 0 : i64, tpu.core_type = #tpu.core_type<tc>, window_params = [{transform_indices = @transform_0, window_bounds = array<i64: 1, 7, 256>}, {transform_indices = @transform_1, window_bounds = array<i64: 1, 1, 256>}, {transform_indices = @transform_2, window_bounds = array<i64: 1, 1, 7, 128>}, {transform_indices = @transform_3, window_bounds = array<i64: 1, 1, 7, 128>}, {transform_indices = @transform_4, window_bounds = array<i64: 1, 1, 7, 128>}]} {
    %c256_i32 = arith.constant 256 : i32
    %0 = arith.muli %arg1, %c256_i32 : i32
    %1 = tpu.iota {dimensions = array<i32: 0>} : vector<7x128xi32>
    %2 = tpu.iota {dimensions = array<i32: 1>} : vector<1x128xi32>
    %cst = arith.constant 0.000000e+00 : f32
    %3 = vector.broadcast %cst : f32 to vector<7x128xf32>
    %c0_i32 = arith.constant 0 : i32
    %c128_i32 = arith.constant 128 : i32
    %4 = arith.muli %c0_i32, %c128_i32 : i32
    %5 = tpu.assume_multiple %4, 128 : i32
    %c0 = arith.constant 0 : index
    %c0_0 = arith.constant 0 : index
    %6 = arith.index_cast %5 : i32 to index
    %7 = vector.load %arg2[%c0, %c0_0, %6] : memref<1x7x256xf32, #tpu.memory_space<vmem>>, vector<1x7x128xf32>
    %8 = vector.shape_cast %7 : vector<1x7x128xf32> to vector<7x128xf32>
    %c0_1 = arith.constant 0 : index
    %c0_2 = arith.constant 0 : index
    %9 = arith.index_cast %5 : i32 to index
    %10 = vector.load %arg3[%c0_1, %c0_2, %9] : memref<1x1x256xi32, #tpu.memory_space<vmem>>, vector<1x1x128xi32>
    %11 = vector.shape_cast %10 : vector<1x1x128xi32> to vector<1x128xi32>
    %12 = arith.addi %0, %5 : i32
    %13 = vector.broadcast %12 : i32 to vector<1x128xi32>
    %14 = arith.addi %13, %2 : vector<1x128xi32>
    %c256_i32_3 = arith.constant 256 : i32
    %15 = vector.broadcast %c256_i32_3 : i32 to vector<1x128xi32>
    %16 = arith.cmpi slt, %14, %15 : vector<1x128xi32>
    %cst_4 = arith.constant 0.000000e+00 : f32
    %17 = vector.shape_cast %16 : vector<1x128xi1> to vector<1x128xi1>
    %18 = vector.broadcast %17 : vector<1x128xi1> to vector<7x128xi1>
    %19 = vector.broadcast %cst_4 : f32 to vector<7x128xf32>
    %20 = arith.select %18, %8, %19 : vector<7x128xi1>, vector<7x128xf32>
    %cst_5 = arith.constant dense<0xFF800000> : vector<128xf32>
    %21 = vector.multi_reduction <maximumf>, %20, %cst_5 [0] : vector<7x128xf32> to vector<128xf32>
    %22 = vector.shape_cast %21 : vector<128xf32> to vector<1x128xf32>
    %23 = vector.broadcast %22 : vector<1x128xf32> to vector<7x128xf32>
    %24 = arith.subf %20, %23 : vector<7x128xf32>
    %25 = math.exp %24 : vector<7x128xf32>
    %cst_6 = arith.constant dense<0.000000e+00> : vector<128xf32>
    %26 = vector.multi_reduction <add>, %25, %cst_6 [0] : vector<7x128xf32> to vector<128xf32>
    %27 = vector.shape_cast %26 : vector<128xf32> to vector<1x128xf32>
    %28 = tpu.reciprocal %27 : vector<1x128xf32> -> vector<1x128xf32>
    %29 = vector.broadcast %28 : vector<1x128xf32> to vector<7x128xf32>
    %30 = arith.mulf %25, %29 : vector<7x128xf32>
    %cst_7 = arith.constant 0.000000e+00 : f32
    %31 = vector.shape_cast %16 : vector<1x128xi1> to vector<1x128xi1>
    %32 = vector.broadcast %31 : vector<1x128xi1> to vector<7x128xi1>
    %33 = vector.broadcast %cst_7 : f32 to vector<7x128xf32>
    %34 = arith.select %32, %30, %33 : vector<7x128xi1>, vector<7x128xf32>
    %35 = vector.broadcast %11 : vector<1x128xi32> to vector<7x128xi32>
    %36 = arith.cmpi eq, %1, %35 : vector<7x128xi32>
    %37 = vector.broadcast %16 : vector<1x128xi1> to vector<7x128xi1>
    %38 = arith.andi %36, %37 : vector<7x128xi1>
    %cst_8 = arith.constant 1.000000e+00 : f32
    %cst_9 = arith.constant 0.000000e+00 : f32
    %39 = vector.broadcast %cst_8 : f32 to vector<7x128xf32>
    %40 = vector.broadcast %cst_9 : f32 to vector<7x128xf32>
    %41 = arith.select %38, %39, %40 : vector<7x128xi1>, vector<7x128xf32>
    %42 = arith.mulf %34, %41 : vector<7x128xf32>
    %43 = arith.addf %3, %42 : vector<7x128xf32>
    %44 = arith.addf %3, %34 : vector<7x128xf32>
    %45 = arith.addf %3, %41 : vector<7x128xf32>
    %c1_i32 = arith.constant 1 : i32
    %c128_i32_10 = arith.constant 128 : i32
    %46 = arith.muli %c1_i32, %c128_i32_10 : i32
    %47 = tpu.assume_multiple %46, 128 : i32
    %c0_11 = arith.constant 0 : index
    %c0_12 = arith.constant 0 : index
    %48 = arith.index_cast %47 : i32 to index
    %49 = vector.load %arg2[%c0_11, %c0_12, %48] : memref<1x7x256xf32, #tpu.memory_space<vmem>>, vector<1x7x128xf32>
    %50 = vector.shape_cast %49 : vector<1x7x128xf32> to vector<7x128xf32>
    %c0_13 = arith.constant 0 : index
    %c0_14 = arith.constant 0 : index
    %51 = arith.index_cast %47 : i32 to index
    %52 = vector.load %arg3[%c0_13, %c0_14, %51] : memref<1x1x256xi32, #tpu.memory_space<vmem>>, vector<1x1x128xi32>
    %53 = vector.shape_cast %52 : vector<1x1x128xi32> to vector<1x128xi32>
    %54 = arith.addi %0, %47 : i32
    %55 = vector.broadcast %54 : i32 to vector<1x128xi32>
    %56 = arith.addi %55, %2 : vector<1x128xi32>
    %c256_i32_15 = arith.constant 256 : i32
    %57 = vector.broadcast %c256_i32_15 : i32 to vector<1x128xi32>
    %58 = arith.cmpi slt, %56, %57 : vector<1x128xi32>
    %cst_16 = arith.constant 0.000000e+00 : f32
    %59 = vector.shape_cast %58 : vector<1x128xi1> to vector<1x128xi1>
    %60 = vector.broadcast %59 : vector<1x128xi1> to vector<7x128xi1>
    %61 = vector.broadcast %cst_16 : f32 to vector<7x128xf32>
    %62 = arith.select %60, %50, %61 : vector<7x128xi1>, vector<7x128xf32>
    %cst_17 = arith.constant dense<0xFF800000> : vector<128xf32>
    %63 = vector.multi_reduction <maximumf>, %62, %cst_17 [0] : vector<7x128xf32> to vector<128xf32>
    %64 = vector.shape_cast %63 : vector<128xf32> to vector<1x128xf32>
    %65 = vector.broadcast %64 : vector<1x128xf32> to vector<7x128xf32>
    %66 = arith.subf %62, %65 : vector<7x128xf32>
    %67 = math.exp %66 : vector<7x128xf32>
    %cst_18 = arith.constant dense<0.000000e+00> : vector<128xf32>
    %68 = vector.multi_reduction <add>, %67, %cst_18 [0] : vector<7x128xf32> to vector<128xf32>
    %69 = vector.shape_cast %68 : vector<128xf32> to vector<1x128xf32>
    %70 = tpu.reciprocal %69 : vector<1x128xf32> -> vector<1x128xf32>
    %71 = vector.broadcast %70 : vector<1x128xf32> to vector<7x128xf32>
    %72 = arith.mulf %67, %71 : vector<7x128xf32>
    %cst_19 = arith.constant 0.000000e+00 : f32
    %73 = vector.shape_cast %58 : vector<1x128xi1> to vector<1x128xi1>
    %74 = vector.broadcast %73 : vector<1x128xi1> to vector<7x128xi1>
    %75 = vector.broadcast %cst_19 : f32 to vector<7x128xf32>
    %76 = arith.select %74, %72, %75 : vector<7x128xi1>, vector<7x128xf32>
    %77 = vector.broadcast %53 : vector<1x128xi32> to vector<7x128xi32>
    %78 = arith.cmpi eq, %1, %77 : vector<7x128xi32>
    %79 = vector.broadcast %58 : vector<1x128xi1> to vector<7x128xi1>
    %80 = arith.andi %78, %79 : vector<7x128xi1>
    %cst_20 = arith.constant 1.000000e+00 : f32
    %cst_21 = arith.constant 0.000000e+00 : f32
    %81 = vector.broadcast %cst_20 : f32 to vector<7x128xf32>
    %82 = vector.broadcast %cst_21 : f32 to vector<7x128xf32>
    %83 = arith.select %80, %81, %82 : vector<7x128xi1>, vector<7x128xf32>
    %84 = arith.mulf %76, %83 : vector<7x128xf32>
    %85 = arith.addf %43, %84 : vector<7x128xf32>
    %86 = arith.addf %44, %76 : vector<7x128xf32>
    %87 = arith.addf %45, %83 : vector<7x128xf32>
    %c2_i32 = arith.constant 2 : i32
    %c0_22 = arith.constant 0 : index
    %c0_23 = arith.constant 0 : index
    %c0_24 = arith.constant 0 : index
    %c0_25 = arith.constant 0 : index
    %88 = vector.load %arg4[%c0_22, %c0_23, %c0_24, %c0_25] : memref<1x1x7x128xf32, #tpu.memory_space<vmem>>, vector<1x1x7x128xf32>
    %89 = vector.shape_cast %88 : vector<1x1x7x128xf32> to vector<7x128xf32>
    %90 = vector.shape_cast %85 : vector<7x128xf32> to vector<1x1x7x128xf32>
    tpu.vector_store %arg4[%c0_22, %c0_23, %c0_24, %c0_25], %90 {strides = array<i32>} : memref<1x1x7x128xf32, #tpu.memory_space<vmem>>, vector<1x1x7x128xf32>,
    %c0_26 = arith.constant 0 : index
    %c0_27 = arith.constant 0 : index
    %c0_28 = arith.constant 0 : index
    %c0_29 = arith.constant 0 : index
    %91 = vector.load %arg5[%c0_26, %c0_27, %c0_28, %c0_29] : memref<1x1x7x128xf32, #tpu.memory_space<vmem>>, vector<1x1x7x128xf32>
    %92 = vector.shape_cast %91 : vector<1x1x7x128xf32> to vector<7x128xf32>
    %93 = vector.shape_cast %86 : vector<7x128xf32> to vector<1x1x7x128xf32>
    tpu.vector_store %arg5[%c0_26, %c0_27, %c0_28, %c0_29], %93 {strides = array<i32>} : memref<1x1x7x128xf32, #tpu.memory_space<vmem>>, vector<1x1x7x128xf32>,
    %c0_30 = arith.constant 0 : index
    %c0_31 = arith.constant 0 : index
    %c0_32 = arith.constant 0 : index
    %c0_33 = arith.constant 0 : index
    %94 = vector.load %arg6[%c0_30, %c0_31, %c0_32, %c0_33] : memref<1x1x7x128xf32, #tpu.memory_space<vmem>>, vector<1x1x7x128xf32>
    %95 = vector.shape_cast %94 : vector<1x1x7x128xf32> to vector<7x128xf32>
    %96 = vector.shape_cast %87 : vector<7x128xf32> to vector<1x1x7x128xf32>
    tpu.vector_store %arg6[%c0_30, %c0_31, %c0_32, %c0_33], %96 {strides = array<i32>} : memref<1x1x7x128xf32, #tpu.memory_space<vmem>>, vector<1x1x7x128xf32>,
    return
  }
  func.func @transform_0(%arg0: i32, %arg1: i32) -> (i32, i32, i32) {
    %c0_i32 = arith.constant 0 : i32
    %c0_i32_0 = arith.constant 0 : i32
    return %arg0, %c0_i32, %arg1 : i32, i32, i32
  }
  func.func @transform_1(%arg0: i32, %arg1: i32) -> (i32, i32, i32) {
    %c0_i32 = arith.constant 0 : i32
    %c0_i32_0 = arith.constant 0 : i32
    return %arg0, %c0_i32, %arg1 : i32, i32, i32
  }
  func.func @transform_2(%arg0: i32, %arg1: i32) -> (i32, i32, i32, i32) {
    %c0_i32 = arith.constant 0 : i32
    %c0_i32_0 = arith.constant 0 : i32
    %c0_i32_1 = arith.constant 0 : i32
    return %arg0, %arg1, %c0_i32, %c0_i32_0 : i32, i32, i32, i32
  }
  func.func @transform_3(%arg0: i32, %arg1: i32) -> (i32, i32, i32, i32) {
    %c0_i32 = arith.constant 0 : i32
    %c0_i32_0 = arith.constant 0 : i32
    %c0_i32_1 = arith.constant 0 : i32
    return %arg0, %arg1, %c0_i32, %c0_i32_0 : i32, i32, i32, i32
  }
  func.func @transform_4(%arg0: i32, %arg1: i32) -> (i32, i32, i32, i32) {
    %c0_i32 = arith.constant 0 : i32
    %c0_i32_0 = arith.constant 0 : i32
    %c0_i32_1 = arith.constant 0 : i32
    return %arg0, %arg1, %c0_i32, %c0_i32_0 : i32, i32, i32, i32
  }
}

</mosaic_0001>

<llo_original>
// kernel: tpu_custom_call.1
$region0: #{tpu_custom_call.1}
  #allocation0 [shape = 'u32[]', space=smem, size = 0x4, offset = 0x4, fixed_abs, tag = 'smem constant byte address 0x4 - core index']
  #allocation1 [shape = 'u32[144,128]{1,0:T(1,128)}', space=vmem, size = 0x12000, scoped, tag = 'internal scratch']
  %s0 = inlined_call_operand.vmem [shape: f32[2,7,256], index: 0, kind: input, shape index: {}]
  %s1 = inlined_call_operand.vmem [shape: s32[2,1,256], index: 1, kind: input, shape index: {}]
  %s2 = inlined_call_operand.vmem [shape: f32[2,1,7,128], index: 2, kind: output, shape index: {0}]
  %s3 = inlined_call_operand.vmem [shape: f32[2,1,7,128], index: 3, kind: output, shape index: {1}]
  %s4 = inlined_call_operand.vmem [shape: f32[2,1,7,128], index: 4, kind: output, shape index: {2}]
  %5 = xla_tuple %s2, %s3, %s4
  %s6 = sld [smem:[#allocation0]]
  $region57: #{tpu_custom_call.1} parent=0
    _
  %s8 = ssub.s32 1, %s6
  %s9 = scalar_select 0, %s8, %s6
  loop: start=0, step=1, limit=4
  $region2: #{tpu_custom_call.1} parent=0 // loop_pre_header
    _
  $region3: #{tpu_custom_call.1} parent=0 // loop_header
    %s11 = sphi 0, %s15
    %p12 = scmp.ge.s32.totalorder %s11, 4
    %s18 = sphi 0, %s30
    %s19 = sphi 0, %s26
    %s20 = sphi 0, %s18
    %s21 = sphi 0, %s19
    %s22 = sphi 0, %s20
    %s23 = sphi 0, %s21
    %s35 = sphi 0, %s37
    %s38 = sphi 0, %s35
    %s39 = sphi 0, %s38
    %s55 = sphi 0, %s39
    %s63 = sphi 0, %s65
    %s66 = sphi 0, %s63
    %s67 = sphi 0, %s66
    %s83 = sphi 0, %s67
    %s91 = sphi 0, %s93
    %s94 = sphi 0, %s91
    %s95 = sphi 0, %s94
    %s111 = sphi 0, %s95
    %s119 = sphi 0, %s121
    %s122 = sphi 0, %s119
    %s123 = sphi 0, %s122
    %s139 = sphi 0, %s123
    %s147 = sphi 0, %s149
    %s150 = sphi 0, %s147
    %s151 = sphi 0, %s150
    %s167 = sphi 0, %s151
  $region4: #{tpu_custom_call.1} parent=0 // loop_header_branch
    %14 = sbr.rel (%p12) target = $region8
  $region5: #{tpu_custom_call.1} parent=0 // loop_body
    %s16 = ssub.s32 %s11, 1
    %s17 = ssub.s32 %s11, 2
    %s24 = sadd.s32 1, %s19
    %p25 = scmp.ge.s32.totalorder %s24, 1
    %s26 = scalar_select %p25, 0, %s24
    %s27 = sadd.s32 1, %s18
    %s28 = scalar_select %p25, %s27, %s18
    %p29 = scmp.ge.s32.totalorder %s28, 2
    %s30 = scalar_select %p29, 0, %s28
    %s31 = ssub.s32 %s18, %s30
    %s32 = ssub.s32 %s19, %s26
    %s33 = sor.u32 %s31, %s32
    %p34 = scmp.eq.s32.totalorder %s33, 0
    %s36 = sadd.s32 %s35, 1
    %s37 = scalar_select %p34, %s35, %s36
    %p40 = pneg %p34
    %p41 = scmp.eq.s32.totalorder %s11, 1
    %p42 = por %p40, %p41
    %p43 = scmp.ne.s32.totalorder %s35, %s38
    %p44 = scmp.eq.s32.totalorder %s11, 0
    %p45 = por %p43, %p44
    %p46 = scmp.ne.s32.totalorder %s35, %s38
    %p47 = scmp.eq.s32.totalorder %s16, 1
    %p48 = por %p46, %p47
    %p49 = scmp.ne.s32.totalorder %s38, %s39
    %p50 = scmp.eq.s32.totalorder %s16, 0
    %p51 = por %p49, %p50
    %p52 = scmp.ne.s32.totalorder %s38, %s39
    %p53 = scmp.eq.s32.totalorder %s17, 1
    %p54 = por %p52, %p53
    %p56 = scmp.ne.s32.totalorder %s39, %s55
    %p57 = scmp.eq.s32.totalorder %s17, 0
    %p58 = por %p56, %p57
    %s59 = ssub.s32 %s18, %s30
    %s60 = ssub.s32 %s19, %s26
    %s61 = sor.u32 %s59, %s60
    %p62 = scmp.eq.s32.totalorder %s61, 0
    %s64 = sadd.s32 %s63, 1
    %s65 = scalar_select %p62, %s63, %s64
    %p68 = pneg %p62
    %p69 = scmp.eq.s32.totalorder %s11, 1
    %p70 = por %p68, %p69
    %p71 = scmp.ne.s32.totalorder %s63, %s66
    %p72 = scmp.eq.s32.totalorder %s11, 0
    %p73 = por %p71, %p72
    %p74 = scmp.ne.s32.totalorder %s63, %s66
    %p75 = scmp.eq.s32.totalorder %s16, 1
    %p76 = por %p74, %p75
    %p77 = scmp.ne.s32.totalorder %s66, %s67
    %p78 = scmp.eq.s32.totalorder %s16, 0
    %p79 = por %p77, %p78
    %p80 = scmp.ne.s32.totalorder %s66, %s67
    %p81 = scmp.eq.s32.totalorder %s17, 1
    %p82 = por %p80, %p81
    %p84 = scmp.ne.s32.totalorder %s67, %s83
    %p85 = scmp.eq.s32.totalorder %s17, 0
    %p86 = por %p84, %p85
    %s87 = ssub.s32 %s18, %s30
    %s88 = ssub.s32 %s19, %s26
    %s89 = sor.u32 %s87, %s88
    %p90 = scmp.eq.s32.totalorder %s89, 0
    %s92 = sadd.s32 %s91, 1
    %s93 = scalar_select %p90, %s91, %s92
    %p96 = pneg %p90
    %p97 = scmp.eq.s32.totalorder %s11, 1
    %p98 = por %p96, %p97
    %p99 = scmp.ne.s32.totalorder %s91, %s94
    %p100 = scmp.eq.s32.totalorder %s11, 0
    %p101 = por %p99, %p100
    %p102 = scmp.ne.s32.totalorder %s91, %s94
    %p103 = scmp.eq.s32.totalorder %s16, 1
    %p104 = por %p102, %p103
    %p105 = scmp.ne.s32.totalorder %s94, %s95
    %p106 = scmp.eq.s32.totalorder %s16, 0
    %p107 = por %p105, %p106
    %p108 = scmp.ne.s32.totalorder %s94, %s95
    %p109 = scmp.eq.s32.totalorder %s17, 1
    %p110 = por %p108, %p109
    %p112 = scmp.ne.s32.totalorder %s95, %s111
    %p113 = scmp.eq.s32.totalorder %s17, 0
    %p114 = por %p112, %p113
    %s115 = ssub.s32 %s18, %s30
    %s116 = ssub.s32 %s19, %s26
    %s117 = sor.u32 %s115, %s116
    %p118 = scmp.eq.s32.totalorder %s117, 0
    %s120 = sadd.s32 %s119, 1
    %s121 = scalar_select %p118, %s119, %s120
    %p124 = pneg %p118
    %p125 = scmp.eq.s32.totalorder %s11, 1
    %p126 = por %p124, %p125
    %p127 = scmp.ne.s32.totalorder %s119, %s122
    %p128 = scmp.eq.s32.totalorder %s11, 0
    %p129 = por %p127, %p128
    %p130 = scmp.ne.s32.totalorder %s119, %s122
    %p131 = scmp.eq.s32.totalorder %s16, 1
    %p132 = por %p130, %p131
    %p133 = scmp.ne.s32.totalorder %s122, %s123
    %p134 = scmp.eq.s32.totalorder %s16, 0
    %p135 = por %p133, %p134
    %p136 = scmp.ne.s32.totalorder %s122, %s123
    %p137 = scmp.eq.s32.totalorder %s17, 1
    %p138 = por %p136, %p137
    %p140 = scmp.ne.s32.totalorder %s123, %s139
    %p141 = scmp.eq.s32.totalorder %s17, 0
    %p142 = por %p140, %p141
    %s143 = ssub.s32 %s18, %s30
    %s144 = ssub.s32 %s19, %s26
    %s145 = sor.u32 %s143, %s144
    %p146 = scmp.eq.s32.totalorder %s145, 0
    %s148 = sadd.s32 %s147, 1
    %s149 = scalar_select %p146, %s147, %s148
    %p152 = pneg %p146
    %p153 = scmp.eq.s32.totalorder %s11, 1
    %p154 = por %p152, %p153
    %p155 = scmp.ne.s32.totalorder %s147, %s150
    %p156 = scmp.eq.s32.totalorder %s11, 0
    %p157 = por %p155, %p156
    %p158 = scmp.ne.s32.totalorder %s147, %s150
    %p159 = scmp.eq.s32.totalorder %s16, 1
    %p160 = por %p158, %p159
    %p161 = scmp.ne.s32.totalorder %s150, %s151
    %p162 = scmp.eq.s32.totalorder %s16, 0
    %p163 = por %p161, %p162
    %p164 = scmp.ne.s32.totalorder %s150, %s151
    %p165 = scmp.eq.s32.totalorder %s17, 1
    %p166 = por %p164, %p165
    %p168 = scmp.ne.s32.totalorder %s151, %s167
    %p169 = scmp.eq.s32.totalorder %s17, 0
    %p170 = por %p168, %p169
    %p171 = scmp.le.s32.totalorder 1, %s11
    %p172 = scmp.lt.s32.totalorder %s11, 3
    %p173 = pnand %p171, %p172
    %p174 = pneg %p173
    // Predicated region
    $region9: #{tpu_custom_call.1} parent=5 // pred_check
      _
    $region10: #{tpu_custom_call.1} parent=5 // pred_check_branch
      %176 = sbr.rel (%p173) target = $region12
    $region11: #{tpu_custom_call.1} parent=5 // pred_region
      %s177 = ssub.s32 %s11, 1
    $region12: #{tpu_custom_call.1} parent=5 // pred_fallthru
      _
    %p178 = scmp.lt.s32.totalorder %s11, 2
    // Predicated region
    $region13: #{tpu_custom_call.1} parent=5 // pred_check
      %p179 = pneg %p178
    $region14: #{tpu_custom_call.1} parent=5 // pred_check_branch
      %181 = sbr.rel (%p179) target = $region16
    $region15: #{tpu_custom_call.1} parent=5 // pred_region
      // Predicated region
      $region17: #{tpu_custom_call.1} parent=15 // pred_check
        %p182 = pneg %p45
      $region18: #{tpu_custom_call.1} parent=15 // pred_check_branch
        %184 = sbr.rel (%p182) target = $region20
      $region19: #{tpu_custom_call.1} parent=15 // pred_region
        %s185 = smul.u32 2, %s19
        %p186 = scmp.lt.s32.totalorder %s18, 1
        %s187 = scalar_select %p186, %s18, 1
        %p188 = scmp.lt.s32.totalorder %s185, 1
        %s189 = scalar_select %p188, %s185, 1
        %s190 = smul.addr %s187, 2
        %s191 = sadd.s32 %s189, %s190
        %s192 = smul.addr %s191, 8
        %s193 = scalar_lea.vmem %s0, %s192
        %s194 = smul.u32 2, %s19
      $region20: #{tpu_custom_call.1} parent=15 // pred_fallthru
        _
      // Predicated region
      $region21: #{tpu_custom_call.1} parent=15 // pred_check
        %p195 = pneg %p73
      $region22: #{tpu_custom_call.1} parent=15 // pred_check_branch
        %197 = sbr.rel (%p195) target = $region24
      $region23: #{tpu_custom_call.1} parent=15 // pred_region
        %s198 = smul.u32 2, %s19
        %p199 = scmp.lt.s32.totalorder %s18, 1
        %s200 = scalar_select %p199, %s18, 1
        %p201 = scmp.lt.s32.totalorder %s198, 1
        %s202 = scalar_select %p201, %s198, 1
        %s203 = smul.addr %s200, 2
        %s204 = sadd.s32 %s202, %s203
        %s205 = scalar_lea.vmem %s1, %s204
        %s206 = smul.u32 2, %s19
      $region24: #{tpu_custom_call.1} parent=15 // pred_fallthru
        _
    $region16: #{tpu_custom_call.1} parent=5 // pred_fallthru
      _
    %p207 = scmp.le.s32.totalorder 1, %s11
    %p208 = scmp.lt.s32.totalorder %s11, 3
    %p209 = pnand %p207, %p208
    %p210 = pneg %p209
    // Predicated region
    $region25: #{tpu_custom_call.1} parent=5 // pred_check
      _
    $region26: #{tpu_custom_call.1} parent=5 // pred_check_branch
      %212 = sbr.rel (%p209) target = $region28
    $region27: #{tpu_custom_call.1} parent=5 // pred_region
      %s213 = ssub.s32 %s11, 1
      %s214 = smul.u32 2, %s21
      %p215 = scmp.lt.s32.totalorder %s20, 1
      %s216 = scalar_select %p215, %s20, 1
      %p217 = scmp.lt.s32.totalorder %s214, 1
      %s218 = scalar_select %p217, %s214, 1
      %s219 = smul.addr %s216, 2
      %s220 = sadd.s32 %s218, %s219
      %s221 = smul.addr %s220, 8
      %s222 = scalar_lea.vmem %s0, %s221
      %p223 = pneg %p51
      %p224 = pneg %p48
      %s225 = smul.u32 2, %s21
      %p226 = scmp.lt.s32.totalorder %s20, 1
      %s227 = scalar_select %p226, %s20, 1
      %p228 = scmp.lt.s32.totalorder %s225, 1
      %s229 = scalar_select %p228, %s225, 1
      %s230 = smul.addr %s227, 2
      %s231 = sadd.s32 %s229, %s230
      %s232 = scalar_lea.vmem %s1, %s231
      %p233 = pneg %p79
      %p234 = pneg %p76
      %p235 = pneg %p107
      %p236 = pneg %p104
      %p237 = scmp.lt.s32.totalorder %s20, 1
      %s238 = scalar_select %p237, %s20, 1
      %p239 = scmp.lt.s32.totalorder %s21, 0
      %s240 = scalar_select %p239, %s21, 0
      %s241 = sadd.s32 %s240, %s238
      %s242 = smul.addr %s241, 8
      %s243 = scalar_lea.vmem %s2, %s242
      %p244 = pneg %p135
      %p245 = pneg %p132
      %p246 = scmp.lt.s32.totalorder %s20, 1
      %s247 = scalar_select %p246, %s20, 1
      %p248 = scmp.lt.s32.totalorder %s21, 0
      %s249 = scalar_select %p248, %s21, 0
      %s250 = sadd.s32 %s249, %s247
      %s251 = smul.addr %s250, 8
      %s252 = scalar_lea.vmem %s3, %s251
      %p253 = pneg %p163
      %p254 = pneg %p160
      %p255 = scmp.lt.s32.totalorder %s20, 1
      %s256 = scalar_select %p255, %s20, 1
      %p257 = scmp.lt.s32.totalorder %s21, 0
      %s258 = scalar_select %p257, %s21, 0
      %s259 = sadd.s32 %s258, %s256
      %s260 = smul.addr %s259, 8
      %s261 = scalar_lea.vmem %s4, %s260
      %s262 = smul.u32 2, %s21
      %p263 = scmp.lt.s32.totalorder %s20, 1
      %s264 = scalar_select %p263, %s20, 1
      %p265 = scmp.lt.s32.totalorder %s262, 1
      %s266 = scalar_select %p265, %s262, 1
      %s267 = smul.addr %s264, 2
      %s268 = sadd.s32 %s266, %s267
      %s269 = smul.addr %s268, 8
      %s270 = scalar_lea.vmem %s0, %s269
      %s271 = smul.u32 2, %s21
      %s272 = smul.u32 2, %s21
      %p273 = scmp.lt.s32.totalorder %s20, 1
      %s274 = scalar_select %p273, %s20, 1
      %p275 = scmp.lt.s32.totalorder %s272, 1
      %s276 = scalar_select %p275, %s272, 1
      %s277 = smul.addr %s274, 2
      %s278 = sadd.s32 %s276, %s277
      %s279 = scalar_lea.vmem %s1, %s278
      %s280 = smul.u32 2, %s21
      %p281 = scmp.lt.s32.totalorder %s20, 1
      %s282 = scalar_select %p281, %s20, 1
      %p283 = scmp.lt.s32.totalorder %s21, 0
      %s284 = scalar_select %p283, %s21, 0
      %s285 = sadd.s32 %s284, %s282
      %s286 = smul.addr %s285, 8
      %s287 = scalar_lea.vmem %s2, %s286
      %p288 = scmp.lt.s32.totalorder %s20, 1
      %s289 = scalar_select %p288, %s20, 1
      %p290 = scmp.lt.s32.totalorder %s21, 0
      %s291 = scalar_select %p290, %s21, 0
      %s292 = sadd.s32 %s291, %s289
      %s293 = smul.addr %s292, 8
      %s294 = scalar_lea.vmem %s3, %s293
      %p295 = scmp.lt.s32.totalorder %s20, 1
      %s296 = scalar_select %p295, %s20, 1
      %p297 = scmp.lt.s32.totalorder %s21, 0
      %s298 = scalar_select %p297, %s21, 0
      %s299 = sadd.s32 %s298, %s296
      %s300 = smul.addr %s299, 8
      %s301 = scalar_lea.vmem %s4, %s300
      %s302 = smul.u32 %s21, 256
      %v303 = vlaneseq
      %v304 = vshrl.u32 %v303, 7
      %v305 = vlaneseq
      %v306 = vand.u32 %v305, 127
      %v307 = vld [vmem:[%s270] sm:$0x7f]
      %v308 = vld [vmem:[%s279] sm:$0x1]
      %s309 = sadd.s32 %s302, 0
      %v310 = vstv %s309
      %v311 = vadd.s32 %v310, %v306
      %vm312 = vcmp.lt.s32.totalorder %v311, 256
      %v313 = vsel %vm312, 1, 0
      %vm314 = vcmp.eq.s32.totalorder %v313, 1
      %v315 = vsel %vm314, %v307, 0.0
      %vm316 = vcmask 1046528
      %v317 = vsel %vm316, %v315, -inf
      %v318 = vrot.slane %v317, 4
      %v319 = vmax.f32 %v317, %v318
      %v320 = vrot.slane %v319, 2
      %v321 = vmax.f32 %v319, %v320
      %v322 = vrot.slane %v321, 1
      %v323 = vmax.f32 %v321, %v322
      %v324 = vsub.f32 %v315, %v323
      %v325 = vmul.f32 %v324, 1.442695
      %v326 = vpow.pop %v325
      %v327 = vsel %vm316, %v326, 0.0
      %v328 = vrot.slane %v327, 4
      %v329 = vadd.f32 %v327, %v328
      %v330 = vrot.slane %v329, 2
      %v331 = vadd.f32 %v329, %v330
      %v332 = vrot.slane %v331, 1
      %v333 = vadd.f32 %v331, %v332
      %v334 = vrcp.pop %v333
      %v335 = vmul.f32 %v326, %v334
      %v336 = vsel %vm314, %v335, 0.0
      %v337 = vlaneseq
      %v338 = vshrl.u32 %v337, 7
      %v339 = vsub.s32 0, %v338
      %v340 = vrot.slane %v308, %v339
      %vm341 = vcmp.eq.s32.totalorder %v304, %v340
      %vm342 = vmand %vm341, %vm314
      %v343 = vsel %vm342, 1.0, 0.0
      %v344 = vmul.f32 %v336, %v343
      %v345 = vadd.f32 %v344, 0.0
      %v346 = vadd.f32 %v336, 0.0
      %v347 = vadd.f32 %v343, 0.0
      %s348 = scalar_lea.vmem %s270, 8
      %v349 = vld [vmem:[%s348] sm:$0x7f]
      %s350 = scalar_lea.vmem %s279, 1
      %v351 = vld [vmem:[%s350] sm:$0x1]
      %s352 = sadd.s32 %s302, 128
      %v353 = vstv %s352
      %v354 = vadd.s32 %v353, %v306
      %vm355 = vcmp.lt.s32.totalorder %v354, 256
      %v356 = vsel %vm355, 1, 0
      %vm357 = vcmp.eq.s32.totalorder %v356, 1
      %v358 = vsel %vm357, %v349, 0.0
      %v359 = vsel %vm316, %v358, -inf
      %v360 = vrot.slane %v359, 4
      %v361 = vmax.f32 %v359, %v360
      %v362 = vrot.slane %v361, 2
      %v363 = vmax.f32 %v361, %v362
      %v364 = vrot.slane %v363, 1
      %v365 = vmax.f32 %v363, %v364
      %v366 = vsub.f32 %v358, %v365
      %v367 = vmul.f32 %v366, 1.442695
      %v368 = vpow.pop %v367
      %v369 = vsel %vm316, %v368, 0.0
      %v370 = vrot.slane %v369, 4
      %v371 = vadd.f32 %v369, %v370
      %v372 = vrot.slane %v371, 2
      %v373 = vadd.f32 %v371, %v372
      %v374 = vrot.slane %v373, 1
      %v375 = vadd.f32 %v373, %v374
      %v376 = vrcp.pop %v375
      %v377 = vmul.f32 %v368, %v376
      %v378 = vsel %vm357, %v377, 0.0
      %v379 = vlaneseq
      %v380 = vshrl.u32 %v379, 7
      %v381 = vsub.s32 0, %v380
      %v382 = vrot.slane %v351, %v381
      %vm383 = vcmp.eq.s32.totalorder %v304, %v382
      %vm384 = vmand %vm383, %vm357
      %v385 = vsel %vm384, 1.0, 0.0
      %v386 = vmul.f32 %v378, %v385
      %v387 = vadd.f32 %v345, %v386
      %v388 = vadd.f32 %v346, %v378
      %v389 = vadd.f32 %v347, %v385
      %390 = vst [vmem:[%s287] sm:$0x7f] %v387
      %391 = vst [vmem:[%s294] sm:$0x7f] %v388
      %392 = vst [vmem:[%s301] sm:$0x7f] %v389
      %p393 = scmp.lt.s32.totalorder %s20, 1
      %s394 = scalar_select %p393, %s20, 1
      %p395 = scmp.lt.s32.totalorder %s21, 0
      %s396 = scalar_select %p395, %s21, 0
      %s397 = sadd.s32 %s396, %s394
      %s398 = smul.addr %s397, 8
      %s399 = scalar_lea.vmem %s2, %s398
      %p400 = scmp.lt.s32.totalorder %s20, 1
      %s401 = scalar_select %p400, %s20, 1
      %p402 = scmp.lt.s32.totalorder %s21, 0
      %s403 = scalar_select %p402, %s21, 0
      %s404 = sadd.s32 %s403, %s401
      %s405 = smul.addr %s404, 8
      %s406 = scalar_lea.vmem %s3, %s405
      %p407 = scmp.lt.s32.totalorder %s20, 1
      %s408 = scalar_select %p407, %s20, 1
      %p409 = scmp.lt.s32.totalorder %s21, 0
      %s410 = scalar_select %p409, %s21, 0
      %s411 = sadd.s32 %s410, %s408
      %s412 = smul.addr %s411, 8
      %s413 = scalar_lea.vmem %s4, %s412
      // Predicated region
      $region29: #{tpu_custom_call.1} parent=27 // pred_check
        %p414 = pneg %p104
      $region30: #{tpu_custom_call.1} parent=27 // pred_check_branch
        %416 = sbr.rel (%p414) target = $region32
      $region31: #{tpu_custom_call.1} parent=27 // pred_region
        _
      $region32: #{tpu_custom_call.1} parent=27 // pred_fallthru
        _
      // Predicated region
      $region33: #{tpu_custom_call.1} parent=27 // pred_check
        %p417 = pneg %p132
      $region34: #{tpu_custom_call.1} parent=27 // pred_check_branch
        %419 = sbr.rel (%p417) target = $region36
      $region35: #{tpu_custom_call.1} parent=27 // pred_region
        _
      $region36: #{tpu_custom_call.1} parent=27 // pred_fallthru
        _
      // Predicated region
      $region37: #{tpu_custom_call.1} parent=27 // pred_check
        %p420 = pneg %p160
      $region38: #{tpu_custom_call.1} parent=27 // pred_check_branch
        %422 = sbr.rel (%p420) target = $region40
      $region39: #{tpu_custom_call.1} parent=27 // pred_region
        _
      $region40: #{tpu_custom_call.1} parent=27 // pred_fallthru
        _
    $region28: #{tpu_custom_call.1} parent=5 // pred_fallthru
      _
    %p423 = scmp.le.s32.totalorder 2, %s11
    // Predicated region
    $region41: #{tpu_custom_call.1} parent=5 // pred_check
      %p424 = pneg %p423
    $region42: #{tpu_custom_call.1} parent=5 // pred_check_branch
      %426 = sbr.rel (%p424) target = $region44
    $region43: #{tpu_custom_call.1} parent=5 // pred_region
      %s427 = ssub.s32 %s11, 2
      // Predicated region
      $region45: #{tpu_custom_call.1} parent=43 // pred_check
        %p428 = pneg %p110
      $region46: #{tpu_custom_call.1} parent=43 // pred_check_branch
        %430 = sbr.rel (%p428) target = $region48
      $region47: #{tpu_custom_call.1} parent=43 // pred_region
        %p431 = scmp.lt.s32.totalorder %s22, 1
        %s432 = scalar_select %p431, %s22, 1
        %p433 = scmp.lt.s32.totalorder %s23, 0
        %s434 = scalar_select %p433, %s23, 0
        %s435 = sadd.s32 %s434, %s432
        %s436 = smul.addr %s435, 8
        %s437 = scalar_lea.vmem %s2, %s436
      $region48: #{tpu_custom_call.1} parent=43 // pred_fallthru
        _
      // Predicated region
      $region49: #{tpu_custom_call.1} parent=43 // pred_check
        %p438 = pneg %p138
      $region50: #{tpu_custom_call.1} parent=43 // pred_check_branch
        %440 = sbr.rel (%p438) target = $region52
      $region51: #{tpu_custom_call.1} parent=43 // pred_region
        %p441 = scmp.lt.s32.totalorder %s22, 1
        %s442 = scalar_select %p441, %s22, 1
        %p443 = scmp.lt.s32.totalorder %s23, 0
        %s444 = scalar_select %p443, %s23, 0
        %s445 = sadd.s32 %s444, %s442
        %s446 = smul.addr %s445, 8
        %s447 = scalar_lea.vmem %s3, %s446
      $region52: #{tpu_custom_call.1} parent=43 // pred_fallthru
        _
      // Predicated region
      $region53: #{tpu_custom_call.1} parent=43 // pred_check
        %p448 = pneg %p166
      $region54: #{tpu_custom_call.1} parent=43 // pred_check_branch
        %450 = sbr.rel (%p448) target = $region56
      $region55: #{tpu_custom_call.1} parent=43 // pred_region
        %p451 = scmp.lt.s32.totalorder %s22, 1
        %s452 = scalar_select %p451, %s22, 1
        %p453 = scmp.lt.s32.totalorder %s23, 0
        %s454 = scalar_select %p453, %s23, 0
        %s455 = sadd.s32 %s454, %s452
        %s456 = smul.addr %s455, 8
        %s457 = scalar_lea.vmem %s4, %s456
      $region56: #{tpu_custom_call.1} parent=43 // pred_fallthru
        _
    $region44: #{tpu_custom_call.1} parent=5 // pred_fallthru
      _
  $region6: #{tpu_custom_call.1} parent=0 // loop_footer
    %s15 = sadd.s32 1, %s11
  $region7: #{tpu_custom_call.1} parent=0 // loop_footer_branch
    %10 = sbr.rel target = $region3
  $region8: #{tpu_custom_call.1} parent=0 // loop_exit
    _

</llo_original>
